<compile_context>
chip_gen: v7x
topology: tpu7x:2x2x1
jax: 0.10.0
libtpu: 0.0.40
codegen_flags: <defaults>
</compile_context>

<pallas_src>
import functools
import math

import jax
import jax.numpy as jnp
from jax.experimental import pallas as pl
from jax.experimental.pallas import tpu as pltpu

_LANE = 128
_SUBLANE = 8


def _round_up(n, m):
    return ((n + m - 1) // m) * m


def pack_eigen(eigen, mxu_dtype=jnp.float32):
    """One-time weight re-layout (do at parameter creation/load time, NOT per call).

    eigen: [out_features, in_features, number_eigens]
    returns w_fused: [in_pad, number_eigens * out_pad]   (in/out zero-padded to 128)
      with w_fused[k, e*out_pad + o] == eigen[o, k, e]  for real k, o.
    """
    d_out, d_in, n_eigens = eigen.shape
    d_in_p = _round_up(d_in, _LANE)
    d_out_p = _round_up(d_out, _LANE)
    w = jnp.transpose(eigen, (1, 2, 0))                      # [in, E, out]
    w = jnp.pad(w, ((0, d_in_p - d_in), (0, 0), (0, d_out_p - d_out)))
    return w.reshape(d_in_p, n_eigens * d_out_p).astype(mxu_dtype)


def _vmem_budget():
    """Generation-aware VMEM capacity and usable budget (leave headroom for
    Mosaic internal scratch)."""
    try:
        cap = int(pltpu.get_tpu_info().vmem_capacity_bytes)
    except Exception:
        cap = 64 * 1024 * 1024  # conservative fallback (v7x per-TC)
    headroom = 10 * 1024 * 1024
    return cap, max(cap - headroom, 8 * 1024 * 1024)


def _weight_spec(block_shape, index_map):
    """Resident weight slab: constant index_map => fetched once; single-buffer it."""
    try:
        return pl.BlockSpec(block_shape, index_map, pipeline_mode=pl.Buffered(1))
    except TypeError:  # older jax without pipeline_mode: accept default buffering
        return pl.BlockSpec(block_shape, index_map)


def _ldq_fused_kernel(x_ref, w_ref, o_ref, *, n_eigens, d_out_p):
    # Single lane-dense MXU matmul over the fused (E*out_pad) axis:
    #   y[b, e*out_pad + o] = sum_k x[b, k] * eigen[o, k, e]
    y = jnp.dot(x_ref[...], w_ref[...], preferred_element_type=jnp.float32)
    y2 = y * y
    # Eigen-axis reduction with vreg-aligned (128-lane) static slices: pure VPU
    # adds, no masked selects / XLU shuffles.
    # TODO(synk): for n_eigens >= 16 move this reduction onto the MXU via a
    # second matmul with a static stacked-identity [E*out_pad, out_pad] operand.
    acc = y2[:, 0:d_out_p]
    for e in range(1, n_eigens):
        acc = acc + y2[:, e * d_out_p:(e + 1) * d_out_p]
    o_ref[...] = acc.astype(o_ref.dtype)


def _ldq_eigen_tiled_kernel(x_ref, w_ref, o_ref, acc_ref):
    # Fallback for weights too large to keep fully resident (v7x 64 MiB VMEM):
    # one eigen slice per grid step along the last ("arbitrary") axis.
    e = pl.program_id(1)

    @pl.when(e == 0)
    def _():
        acc_ref[...] = jnp.zeros_like(acc_ref)

    y = jnp.dot(x_ref[...], w_ref[...], preferred_element_type=jnp.float32)
    acc_ref[...] += y * y

    @pl.when(e == pl.num_programs(1) - 1)
    def _():
        o_ref[...] = acc_ref[...].astype(o_ref.dtype)


def low_dimensional_quadratic(x, w_fused, n_eigens, out_features, *,
                              force_eigen_tiled=False):
    """Forward: out = sum_e (x @ eigen[:,:,e].T) ** 2.

    x:       [B, in_features]
    w_fused: [in_pad, n_eigens * out_pad]  from pack_eigen (hoisted, possibly bf16)
    """
    B, d_in = x.shape
    d_in_p, eo = w_fused.shape
    assert eo % n_eigens == 0
    d_out_p = eo // n_eigens
    assert d_in_p % _LANE == 0 and d_out_p % _LANE == 0
    assert d_in <= d_in_p and out_features <= d_out_p

    out_dtype = x.dtype
    mxu_dtype = w_fused.dtype
    x_item = jnp.dtype(mxu_dtype).itemsize
    w_item = jnp.dtype(mxu_dtype).itemsize
    out_item = jnp.dtype(out_dtype).itemsize

    cap, budget = _vmem_budget()

    # --- path selection (generation-aware) -----------------------------------
    fused_w_bytes = d_in_p * eo * w_item                     # single-buffered slab
    # Per-batch-row VMEM: double-buffered x tile + double-buffered out tile
    # + f32 matmul intermediate y (and the running acc for the tiled path).
    per_row_fused = 2 * d_in_p * x_item + 2 * d_out_p * out_item + (eo + d_out_p) * 4
    per_row_tiled = 2 * d_in_p * x_item + 2 * d_out_p * out_item + 2 * d_out_p * 4
    fused_fits = (fused_w_bytes <= int(0.4 * cap)
                  and fused_w_bytes + _SUBLANE * per_row_fused <= budget)
    use_fused = fused_fits and not force_eigen_tiled

    if use_fused:
        resident = fused_w_bytes
        per_row = per_row_fused
    else:
        resident = 2 * d_in_p * d_out_p * w_item             # double-buffered W slice
        per_row = per_row_tiled
    assert resident + _SUBLANE * per_row <= budget, (
        "layer too large for VMEM even with eigen tiling; add an out-feature "
        "grid axis")

    # --- adaptive batch tile ---------------------------------------------------
    tb_cap = (budget - resident) // per_row
    tb = int(min(tb_cap, 512, _round_up(B, _SUBLANE)))
    tb = max(_SUBLANE, (tb // _SUBLANE) * _SUBLANE)

    nb = pl.cdiv(B, tb)
    B_pad = nb * tb

    est_bytes = resident + tb * per_row + (1 << 20)
    vmem_limit = int(min(max(int(est_bytes * 1.5), 16 * 1024 * 1024), budget))

    # Zero-pad batch / in_features and cast to the MXU operand dtype (halves the
    # activation DMA when bf16 weights are used).  Padding rows/cols are free:
    # they only produce ignored output rows / zero contributions.
    xp = jnp.pad(x.astype(mxu_dtype), ((0, B_pad - B), (0, d_in_p - d_in)))

    if use_fused:
        kernel = functools.partial(_ldq_fused_kernel,
                                   n_eigens=n_eigens, d_out_p=d_out_p)
        out_p = pl.pallas_call(
            kernel,
            out_shape=jax.ShapeDtypeStruct((B_pad, d_out_p), out_dtype),
            grid_spec=pltpu.PrefetchScalarGridSpec(
                num_scalar_prefetch=0,
                grid=(nb,),
                in_specs=[
                    pl.BlockSpec((tb, d_in_p), lambda i: (i, 0)),
                    _weight_spec((d_in_p, eo), lambda i: (0, 0)),
                ],
                out_specs=pl.BlockSpec((tb, d_out_p), lambda i: (i, 0)),
            ),
            compiler_params=pltpu.CompilerParams(
                dimension_semantics=("parallel",),
                vmem_limit_bytes=vmem_limit,
            ),
        )(xp, w_fused)
    else:
        out_p = pl.pallas_call(
            _ldq_eigen_tiled_kernel,
            out_shape=jax.ShapeDtypeStruct((B_pad, d_out_p), out_dtype),
            grid_spec=pltpu.PrefetchScalarGridSpec(
                num_scalar_prefetch=0,
                grid=(nb, n_eigens),
                in_specs=[
                    pl.BlockSpec((tb, d_in_p), lambda i, e: (i, 0)),
                    pl.BlockSpec((d_in_p, d_out_p), lambda i, e: (0, e)),
                ],
                out_specs=pl.BlockSpec((tb, d_out_p), lambda i, e: (i, 0)),
                scratch_shapes=[pltpu.VMEM((tb, d_out_p), jnp.float32)],
            ),
            compiler_params=pltpu.CompilerParams(
                dimension_semantics=("parallel", "arbitrary"),
                vmem_limit_bytes=vmem_limit,
            ),
        )(xp, w_fused)

    return out_p[:B, :out_features]


def _reference(x, eigen):
    # Pure-JAX reference of the PyTorch forward (the number_eigens >= 1 branch
    # collapses to the same formula: sum_e (x @ W_e.T)^2).
    y = jnp.einsum("bk,oke->boe", x, eigen)  # [B, out, E]
    return jnp.sum(y * y, axis=-1)


if __name__ == "__main__":
    key = jax.random.PRNGKey(0)
    k_x, k_w = jax.random.split(key)

    # Small shapes consistent with the module
    B = 6
    in_features = 32
    out_features = 32
    number_eigens = 4

    # Deterministic parameter init mimicking kaiming_normal_(a=10), mode='fan_in':
    #   fan_in = in_features * number_eigens (3-D tensor), gain = sqrt(2/(1+a^2))
    fan_in = in_features * number_eigens
    gain = math.sqrt(2.0 / (1.0 + 10.0 ** 2))
    std = gain / math.sqrt(fan_in)
    eigen = std * jax.random.normal(
        k_w, (out_features, in_features, number_eigens), dtype=jnp.float32
    )
    x = jax.random.normal(k_x, (B, in_features), dtype=jnp.float32)

    ref = _reference(x, eigen)

    # --- f32 fused single-matmul path ---------------------------------------
    w32 = jax.block_until_ready(pack_eigen(eigen))
    out = jax.block_until_ready(
        low_dimensional_quadratic(x, w32, number_eigens, out_features))
    assert out.shape == (B, out_features)
    assert jnp.allclose(out, ref, rtol=2e-2, atol=1e-4), "fused f32 mismatch"

    # --- eigen-tiled accumulator fallback (v7x path), forced to exercise it --
    out_tiled = jax.block_until_ready(
        low_dimensional_quadratic(x, w32, number_eigens, out_features,
                                  force_eigen_tiled=True))
    assert jnp.allclose(out_tiled, ref, rtol=2e-2, atol=1e-4), "tiled mismatch"

    # --- bf16 MXU-operand variant (v5e/v6e/v7x bf16-native MXU) ---------------
    # Squaring amplifies the cast error, so tolerance is looser by design.
    w16 = jax.block_until_ready(pack_eigen(eigen, mxu_dtype=jnp.bfloat16))
    out_bf16 = jax.block_until_ready(
        low_dimensional_quadratic(x, w16, number_eigens, out_features))
    assert jnp.allclose(out_bf16, ref, rtol=1e-1, atol=2e-3), "bf16 mismatch"

    print("KERNEL_OK")
</pallas_src>

<mosaic_0001>
module attributes {stable_mosaic.version = 11 : i64} {
  func.func @_ldq_fused_kernel(%arg0: i32, %arg1: memref<8x128xf32, #tpu.memory_space<vmem>>, %arg2: memref<128x512xf32, #tpu.memory_space<vmem>>, %arg3: memref<8x128xf32, #tpu.memory_space<vmem>>) attributes {dimension_semantics = [#tpu.dimension_semantics<parallel>], iteration_bounds = array<i64: 1>, scalar_prefetch = 0 : i64, scratch_operands = 0 : i64, tpu.core_type = #tpu.core_type<tc>, window_params = [{transform_indices = @transform_0, window_bounds = array<i64: 8, 128>}, {pipeline_mode = #tpu.pipeline_mode<synchronous>, transform_indices = @transform_1, window_bounds = array<i64: 128, 512>}, {transform_indices = @transform_2, window_bounds = array<i64: 8, 128>}]} {
    %c0 = arith.constant 0 : index
    %c0_0 = arith.constant 0 : index
    %0 = vector.load %arg1[%c0, %c0_0] : memref<8x128xf32, #tpu.memory_space<vmem>>, vector<8x128xf32>
    %c0_1 = arith.constant 0 : index
    %c0_2 = arith.constant 0 : index
    %1 = vector.load %arg2[%c0_1, %c0_2] : memref<128x512xf32, #tpu.memory_space<vmem>>, vector<128x512xf32>
    %cst = arith.constant dense<0.000000e+00> : vector<8x512xf32>
    %2 = tpu.matmul %0, %1, %cst {dimension_numbers = #tpu.dot_dimension_numbers<[1], [0], [0], [1], [0, 0, 1, 1], [], []>} : vector<8x128xf32>, vector<128x512xf32>, vector<8x512xf32> -> vector<8x512xf32>
    %3 = arith.mulf %2, %2 : vector<8x512xf32>
    %4 = vector.extract_strided_slice %3 {offsets = [0, 0], sizes = [8, 128], strides = [1, 1]} : vector<8x512xf32> to vector<8x128xf32>
    %5 = vector.extract_strided_slice %3 {offsets = [0, 128], sizes = [8, 128], strides = [1, 1]} : vector<8x512xf32> to vector<8x128xf32>
    %6 = arith.addf %4, %5 : vector<8x128xf32>
    %7 = vector.extract_strided_slice %3 {offsets = [0, 256], sizes = [8, 128], strides = [1, 1]} : vector<8x512xf32> to vector<8x128xf32>
    %8 = arith.addf %6, %7 : vector<8x128xf32>
    %9 = vector.extract_strided_slice %3 {offsets = [0, 384], sizes = [8, 128], strides = [1, 1]} : vector<8x512xf32> to vector<8x128xf32>
    %10 = arith.addf %8, %9 : vector<8x128xf32>
    %c0_3 = arith.constant 0 : index
    %c0_4 = arith.constant 0 : index
    %11 = vector.load %arg3[%c0_3, %c0_4] : memref<8x128xf32, #tpu.memory_space<vmem>>, vector<8x128xf32>
    tpu.vector_store %arg3[%c0_3, %c0_4], %10 {strides = array<i32>} : memref<8x128xf32, #tpu.memory_space<vmem>>, vector<8x128xf32>,
    return
  }
  func.func @transform_0(%arg0: i32) -> (i32, i32) {
    %c0_i32 = arith.constant 0 : i32
    %c0_i32_0 = arith.constant 0 : i32
    return %arg0, %c0_i32 : i32, i32
  }
  func.func @transform_1(%arg0: i32) -> (i32, i32) {
    %c0_i32 = arith.constant 0 : i32
    %c0_i32_0 = arith.constant 0 : i32
    %c0_i32_1 = arith.constant 0 : i32
    return %c0_i32, %c0_i32_0 : i32, i32
  }
  func.func @transform_2(%arg0: i32) -> (i32, i32) {
    %c0_i32 = arith.constant 0 : i32
    %c0_i32_0 = arith.constant 0 : i32
    return %arg0, %c0_i32 : i32, i32
  }
}

</mosaic_0001>

<llo_original>
// kernel: tpu_custom_call.1
$region0: #{tpu_custom_call.1}
  #allocation0 [shape = 'u32[]', space=smem, size = 0x4, offset = 0x4, fixed_abs, tag = 'smem constant byte address 0x4 - core index']
  #allocation1 [shape = 'u32[144,128]{1,0:T(1,128)}', space=vmem, size = 0x12000, scoped, tag = 'internal scratch']
  %s0 = inlined_call_operand.hbm [shape: f32[8,128], index: 0, kind: input, shape index: {}]
  %s1 = inlined_call_operand.hbm [shape: f32[128,512], index: 1, kind: input, shape index: {}]
  %s2 = inlined_call_operand.hbm [shape: f32[8,128], index: 2, kind: output, shape index: {}]
  %s3 = sld [smem:[#allocation0]]
  $region26: #{tpu_custom_call.1} parent=0
    _
  %s5 = ssub.s32 1, %s3
  %s6 = scalar_select 0, %s5, %s3
  $region1: #{tpu_custom_call.1} parent=0
    #allocation2 [shape = 'u8[4096]{0}', space=vmem, size = 0x1000, scoped, tag = 'input window, operand 0, single buffered']
    #allocation3 [shape = 's32[1]{0}', space=sflag, size = 0x4, scoped, tag = 'scoped memory for tpu_custom_call.1']
    #allocation4 [shape = 's32[1]{0}', space=sflag, size = 0x4, scoped, tag = 'scoped memory for tpu_custom_call.1']
    #allocation5 [shape = 'u8[262144]{0}', space=vmem, size = 0x40000, scoped, tag = 'input window, operand 1, single buffered']
    #allocation6 [shape = 's32[1]{0}', space=sflag, size = 0x4, scoped, tag = 'scoped memory for tpu_custom_call.1']
    #allocation7 [shape = 'u8[4096]{0}', space=vmem, size = 0x1000, scoped, tag = 'output window, operand 0, single buffered']
    %7 = vsyncpa [#allocation3], 0
    %8 = vsyncpa [#allocation6], 0
    %9 = vsyncpa [#allocation4], 0
    // Predicated region
    $region2: #{tpu_custom_call.1} parent=1 // pred_check
      _
    $region3: #{tpu_custom_call.1} parent=1 // pred_check_branch
      %11 = sbr.rel (0) target = $region5
    $region4: #{tpu_custom_call.1} parent=1 // pred_region
      %s13 = ssub.s32 128, 128
      %14 = vsyncadd [#allocation3], %s13
      %s16 = sshll.u32 [#allocation2], 4
      %s17 = int_to_ptr.vmem [resolvable:$true] %s16
      %19 = dma.hbm_to_vmem [thread:$0]  %s0, 128, %s17, [#allocation3]
    $region5: #{tpu_custom_call.1} parent=1 // pred_fallthru
      _
    // Predicated region
    $region6: #{tpu_custom_call.1} parent=1 // pred_check
      _
    $region7: #{tpu_custom_call.1} parent=1 // pred_check_branch
      %21 = sbr.rel (0) target = $region9
    $region8: #{tpu_custom_call.1} parent=1 // pred_region
      %s23 = ssub.s32 8192, 8192
      %24 = vsyncadd [#allocation6], %s23
      %s25 = sshll.u32 [#allocation5], 4
      %s26 = int_to_ptr.vmem [resolvable:$true] %s25
      %31 = dma.hbm_to_vmem [thread:$0]  %s1, 8192, %s26, [#allocation6], 512, 512, 32
    $region9: #{tpu_custom_call.1} parent=1 // pred_fallthru
      _
    // Predicated region
    $region10: #{tpu_custom_call.1} parent=1 // pred_check
      _
    $region11: #{tpu_custom_call.1} parent=1 // pred_check_branch
      %33 = sbr.rel (0) target = $region13
    $region12: #{tpu_custom_call.1} parent=1 // pred_region
      %34 = dma.done [#allocation3], 128
    $region13: #{tpu_custom_call.1} parent=1 // pred_fallthru
      _
    // Predicated region
    $region14: #{tpu_custom_call.1} parent=1 // pred_check
      _
    $region15: #{tpu_custom_call.1} parent=1 // pred_check_branch
      %36 = sbr.rel (0) target = $region17
    $region16: #{tpu_custom_call.1} parent=1 // pred_region
      %37 = dma.done [#allocation6], 8192
    $region17: #{tpu_custom_call.1} parent=1 // pred_fallthru
      _
    %v38 = vld [vmem:[#allocation2] sm:$0xff]
    %v39 = vld [vmem:[#allocation5] sm:$0xff]
    %v40 = vld [vmem:[#allocation5 + $0x8] sm:$0xff]
    %v41 = vld [vmem:[#allocation5 + $0x10] sm:$0xff]
    %v42 = vld [vmem:[#allocation5 + $0x18] sm:$0xff]
    %v43 = vld [vmem:[#allocation5 + $0x20] sm:$0xff]
    %v44 = vld [vmem:[#allocation5 + $0x28] sm:$0xff]
    %v45 = vld [vmem:[#allocation5 + $0x30] sm:$0xff]
    %v46 = vld [vmem:[#allocation5 + $0x38] sm:$0xff]
    %v47 = vld [vmem:[#allocation5 + $0x40] sm:$0xff]
    %v48 = vld [vmem:[#allocation5 + $0x48] sm:$0xff]
    %v49 = vld [vmem:[#allocation5 + $0x50] sm:$0xff]
    %v50 = vld [vmem:[#allocation5 + $0x58] sm:$0xff]
    %v51 = vld [vmem:[#allocation5 + $0x60] sm:$0xff]
    %v52 = vld [vmem:[#allocation5 + $0x68] sm:$0xff]
    %v53 = vld [vmem:[#allocation5 + $0x70] sm:$0xff]
    %v54 = vld [vmem:[#allocation5 + $0x78] sm:$0xff]
    %v55 = vld [vmem:[#allocation5 + $0x80] sm:$0xff]
    %v56 = vld [vmem:[#allocation5 + $0x88] sm:$0xff]
    %v57 = vld [vmem:[#allocation5 + $0x90] sm:$0xff]
    %v58 = vld [vmem:[#allocation5 + $0x98] sm:$0xff]
    %v59 = vld [vmem:[#allocation5 + $0xa0] sm:$0xff]
    %v60 = vld [vmem:[#allocation5 + $0xa8] sm:$0xff]
    %v61 = vld [vmem:[#allocation5 + $0xb0] sm:$0xff]
    %v62 = vld [vmem:[#allocation5 + $0xb8] sm:$0xff]
    %v63 = vld [vmem:[#allocation5 + $0xc0] sm:$0xff]
    %v64 = vld [vmem:[#allocation5 + $0xc8] sm:$0xff]
    %v65 = vld [vmem:[#allocation5 + $0xd0] sm:$0xff]
    %v66 = vld [vmem:[#allocation5 + $0xd8] sm:$0xff]
    %v67 = vld [vmem:[#allocation5 + $0xe0] sm:$0xff]
    %v68 = vld [vmem:[#allocation5 + $0xe8] sm:$0xff]
    %v69 = vld [vmem:[#allocation5 + $0xf0] sm:$0xff]
    %v70 = vld [vmem:[#allocation5 + $0xf8] sm:$0xff]
    %v71 = vld [vmem:[#allocation5 + $0x100] sm:$0xff]
    %v72 = vld [vmem:[#allocation5 + $0x108] sm:$0xff]
    %v73 = vld [vmem:[#allocation5 + $0x110] sm:$0xff]
    %v74 = vld [vmem:[#allocation5 + $0x118] sm:$0xff]
    %v75 = vld [vmem:[#allocation5 + $0x120] sm:$0xff]
    %v76 = vld [vmem:[#allocation5 + $0x128] sm:$0xff]
    %v77 = vld [vmem:[#allocation5 + $0x130] sm:$0xff]
    %v78 = vld [vmem:[#allocation5 + $0x138] sm:$0xff]
    %v79 = vld [vmem:[#allocation5 + $0x140] sm:$0xff]
    %v80 = vld [vmem:[#allocation5 + $0x148] sm:$0xff]
    %v81 = vld [vmem:[#allocation5 + $0x150] sm:$0xff]
    %v82 = vld [vmem:[#allocation5 + $0x158] sm:$0xff]
    %v83 = vld [vmem:[#allocation5 + $0x160] sm:$0xff]
    %v84 = vld [vmem:[#allocation5 + $0x168] sm:$0xff]
    %v85 = vld [vmem:[#allocation5 + $0x170] sm:$0xff]
    %v86 = vld [vmem:[#allocation5 + $0x178] sm:$0xff]
    %v87 = vld [vmem:[#allocation5 + $0x180] sm:$0xff]
    %v88 = vld [vmem:[#allocation5 + $0x188] sm:$0xff]
    %v89 = vld [vmem:[#allocation5 + $0x190] sm:$0xff]
    %v90 = vld [vmem:[#allocation5 + $0x198] sm:$0xff]
    %v91 = vld [vmem:[#allocation5 + $0x1a0] sm:$0xff]
    %v92 = vld [vmem:[#allocation5 + $0x1a8] sm:$0xff]
    %v93 = vld [vmem:[#allocation5 + $0x1b0] sm:$0xff]
    %v94 = vld [vmem:[#allocation5 + $0x1b8] sm:$0xff]
    %v95 = vld [vmem:[#allocation5 + $0x1c0] sm:$0xff]
    %v96 = vld [vmem:[#allocation5 + $0x1c8] sm:$0xff]
    %v97 = vld [vmem:[#allocation5 + $0x1d0] sm:$0xff]
    %v98 = vld [vmem:[#allocation5 + $0x1d8] sm:$0xff]
    %v99 = vld [vmem:[#allocation5 + $0x1e0] sm:$0xff]
    %v100 = vld [vmem:[#allocation5 + $0x1e8] sm:$0xff]
    %v101 = vld [vmem:[#allocation5 + $0x1f0] sm:$0xff]
    %v102 = vld [vmem:[#allocation5 + $0x1f8] sm:$0xff]
    %103 = vmatprep.subr.mxu0 %v40
    %104 = vmatpush1.msra.mxu0 %v39
    %105 = vmatprep.subr.mxu0 %v44
    %106 = vmatpush1.msra.mxu0 %v43
    %107 = vmatprep.subr.mxu0 %v48
    %108 = vmatpush1.msra.mxu0 %v47
    %109 = vmatprep.subr.mxu0 %v52
    %110 = vmatpush1.msra.mxu0 %v51
    %111 = vmatprep.subr.mxu0 %v56
    %112 = vmatpush1.msra.mxu0 %v55
    %113 = vmatprep.subr.mxu0 %v60
    %114 = vmatpush1.msra.mxu0 %v59
    %115 = vmatprep.subr.mxu0 %v64
    %116 = vmatpush1.msra.mxu0 %v63
    %117 = vmatprep.subr.mxu0 %v68
    %118 = vmatpush1.msra.mxu0 %v67
    %119 = vmatprep.subr.mxu0 %v72
    %120 = vmatpush1.msra.mxu0 %v71
    %121 = vmatprep.subr.mxu0 %v76
    %122 = vmatpush1.msra.mxu0 %v75
    %123 = vmatprep.subr.mxu0 %v80
    %124 = vmatpush1.msra.mxu0 %v79
    %125 = vmatprep.subr.mxu0 %v84
    %126 = vmatpush1.msra.mxu0 %v83
    %127 = vmatprep.subr.mxu0 %v88
    %128 = vmatpush1.msra.mxu0 %v87
    %129 = vmatprep.subr.mxu0 %v92
    %130 = vmatpush1.msra.mxu0 %v91
    %131 = vmatprep.subr.mxu0 %v96
    %132 = vmatpush1.msra.mxu0 %v95
    %133 = vmatprep.subr.mxu0 %v100
    %134 = vmatpush1.msra.mxu0 %v99
    %135 = vmatprep.subr.mxu0 0.0
    %136 = vmatpush1.msra.mxu0 0.0
    %137 = vmatprep.subr.mxu0 0.0
    %138 = vmatpush1.msra.mxu0 0.0
    %139 = vmatprep.subr.mxu0 0.0
    %140 = vmatpush1.msra.mxu0 0.0
    %141 = vmatprep.subr.mxu0 0.0
    %142 = vmatpush1.msra.mxu0 0.0
    %143 = vmatprep.subr.mxu0 0.0
    %144 = vmatpush1.msra.mxu0 0.0
    %145 = vmatprep.subr.mxu0 0.0
    %146 = vmatpush1.msra.mxu0 0.0
    %147 = vmatprep.subr.mxu0 0.0
    %148 = vmatpush1.msra.mxu0 0.0
    %149 = vmatprep.subr.mxu0 0.0
    %150 = vmatpush1.msra.mxu0 0.0
    %151 = vmatprep.subr.mxu0 0.0
    %152 = vmatpush1.msra.mxu0 0.0
    %153 = vmatprep.subr.mxu0 0.0
    %154 = vmatpush1.msra.mxu0 0.0
    %155 = vmatprep.subr.mxu0 0.0
    %156 = vmatpush1.msra.mxu0 0.0
    %157 = vmatprep.subr.mxu0 0.0
    %158 = vmatpush1.msra.mxu0 0.0
    %159 = vmatprep.subr.mxu0 0.0
    %160 = vmatpush1.msra.mxu0 0.0
    %161 = vmatprep.subr.mxu0 0.0
    %162 = vmatpush1.msra.mxu0 0.0
    %163 = vmatprep.subr.mxu0 0.0
    %164 = vmatpush1.msra.mxu0 0.0
    %165 = vmatprep.subr.mxu0 0.0
    %166 = vmatpush1.msra.mxu0 0.0
    %167 = vmatprep.mubr.f32.mxu0 0.0
    %168 = vmatmul.mubr.f32.gmra.mrb[0].mxu0 %v38
    %v169 = vpop.f32.mrb[0].mxu0
    %v170 = vadd.f32 0.0, %v169
    %v171 = vpop.f32.mrb[0].mxu0
    %v172 = vadd.f32 0.0, %v171
    %173 = vdwg.mxu0
    %174 = vmatprep.subr.mxu0 %v42
    %175 = vmatpush1.msra.mxu0 %v41
    %176 = vmatprep.subr.mxu0 %v46
    %177 = vmatpush1.msra.mxu0 %v45
    %178 = vmatprep.subr.mxu0 %v50
    %179 = vmatpush1.msra.mxu0 %v49
    %180 = vmatprep.subr.mxu0 %v54
    %181 = vmatpush1.msra.mxu0 %v53
    %182 = vmatprep.subr.mxu0 %v58
    %183 = vmatpush1.msra.mxu0 %v57
    %184 = vmatprep.subr.mxu0 %v62
    %185 = vmatpush1.msra.mxu0 %v61
    %186 = vmatprep.subr.mxu0 %v66
    %187 = vmatpush1.msra.mxu0 %v65
    %188 = vmatprep.subr.mxu0 %v70
    %189 = vmatpush1.msra.mxu0 %v69
    %190 = vmatprep.subr.mxu0 %v74
    %191 = vmatpush1.msra.mxu0 %v73
    %192 = vmatprep.subr.mxu0 %v78
    %193 = vmatpush1.msra.mxu0 %v77
    %194 = vmatprep.subr.mxu0 %v82
    %195 = vmatpush1.msra.mxu0 %v81
    %196 = vmatprep.subr.mxu0 %v86
    %197 = vmatpush1.msra.mxu0 %v85
    %198 = vmatprep.subr.mxu0 %v90
    %199 = vmatpush1.msra.mxu0 %v89
    %200 = vmatprep.subr.mxu0 %v94
    %201 = vmatpush1.msra.mxu0 %v93
    %202 = vmatprep.subr.mxu0 %v98
    %203 = vmatpush1.msra.mxu0 %v97
    %204 = vmatprep.subr.mxu0 %v102
    %205 = vmatpush1.msra.mxu0 %v101
    %206 = vmatprep.subr.mxu0 0.0
    %207 = vmatpush1.msra.mxu0 0.0
    %208 = vmatprep.subr.mxu0 0.0
    %209 = vmatpush1.msra.mxu0 0.0
    %210 = vmatprep.subr.mxu0 0.0
    %211 = vmatpush1.msra.mxu0 0.0
    %212 = vmatprep.subr.mxu0 0.0
    %213 = vmatpush1.msra.mxu0 0.0
    %214 = vmatprep.subr.mxu0 0.0
    %215 = vmatpush1.msra.mxu0 0.0
    %216 = vmatprep.subr.mxu0 0.0
    %217 = vmatpush1.msra.mxu0 0.0
    %218 = vmatprep.subr.mxu0 0.0
    %219 = vmatpush1.msra.mxu0 0.0
    %220 = vmatprep.subr.mxu0 0.0
    %221 = vmatpush1.msra.mxu0 0.0
    %222 = vmatprep.subr.mxu0 0.0
    %223 = vmatpush1.msra.mxu0 0.0
    %224 = vmatprep.subr.mxu0 0.0
    %225 = vmatpush1.msra.mxu0 0.0
    %226 = vmatprep.subr.mxu0 0.0
    %227 = vmatpush1.msra.mxu0 0.0
    %228 = vmatprep.subr.mxu0 0.0
    %229 = vmatpush1.msra.mxu0 0.0
    %230 = vmatprep.subr.mxu0 0.0
    %231 = vmatpush1.msra.mxu0 0.0
    %232 = vmatprep.subr.mxu0 0.0
    %233 = vmatpush1.msra.mxu0 0.0
    %234 = vmatprep.subr.mxu0 0.0
    %235 = vmatpush1.msra.mxu0 0.0
    %236 = vmatprep.subr.mxu0 0.0
    %237 = vmatpush1.msra.mxu0 0.0
    %238 = vmatprep.mubr.f32.mxu0 0.0
    %239 = vmatmul.mubr.f32.gmra.mrb[0].mxu0 %v38
    %v240 = vpop.f32.mrb[0].mxu0
    %v241 = vadd.f32 0.0, %v240
    %v242 = vpop.f32.mrb[0].mxu0
    %v243 = vadd.f32 0.0, %v242
    %244 = vdwg.mxu0
    %v245 = vmul.f32 %v170, %v170
    %v246 = vmul.f32 %v172, %v172
    %v247 = vmul.f32 %v241, %v241
    %v248 = vmul.f32 %v243, %v243
    %v249 = vadd.f32 %v245, %v246
    %v250 = vadd.f32 %v249, %v247
    %v251 = vadd.f32 %v250, %v248
    %252 = vst [vmem:[#allocation7] sm:$0xff] %v251
    // Predicated region
    $region18: #{tpu_custom_call.1} parent=1 // pred_check
      _
    $region19: #{tpu_custom_call.1} parent=1 // pred_check_branch
      %254 = sbr.rel (0) target = $region21
    $region20: #{tpu_custom_call.1} parent=1 // pred_region
      %s256 = ssub.s32 128, 128
      %257 = vsyncadd [#allocation4], %s256
      %s259 = sshll.u32 [#allocation7], 4
      %s260 = int_to_ptr.vmem [resolvable:$true] %s259
      %262 = dma.vmem_to_hbm [thread:$0]  %s260, 128, %s2, [#allocation4]
    $region21: #{tpu_custom_call.1} parent=1 // pred_fallthru
      _
    // Predicated region
    $region22: #{tpu_custom_call.1} parent=1 // pred_check
      _
    $region23: #{tpu_custom_call.1} parent=1 // pred_check_branch
      %264 = sbr.rel (0) target = $region25
    $region24: #{tpu_custom_call.1} parent=1 // pred_region
      %265 = dma.done [#allocation4], 128
    $region25: #{tpu_custom_call.1} parent=1 // pred_fallthru
      _
    %266 = vsyncpa [#allocation3], 1
    %267 = vsyncpa [#allocation6], 1
    %268 = vsyncpa [#allocation4], 1

</llo_original>
